<compile_context>
chip_gen: v7x
topology: tpu7x:2x2x1
jax: 0.10.0
libtpu: 0.0.40
codegen_flags: <defaults>
</compile_context>

<pallas_src>
import functools
import math

import jax
import jax.numpy as jnp
from jax.experimental import pallas as pl
from jax.experimental.pallas import tpu as pltpu


def _round_up(a: int, b: int) -> int:
    return -(-a // b) * b


def _vmem_ceiling_bytes() -> int:
    """Generation-aware VMEM budget (~75% of physical, capped at 96 MiB).

    v7x has 64 MiB physical VMEM per core -> ~48 MiB ceiling; v5e/v6e have
    128 MiB -> 96 MiB ceiling.  Conservative fallback if the query fails.
    """
    try:
        phys = int(pltpu.get_tpu_info().vmem_capacity_bytes)
    except Exception:  # defensive: trace-time query only
        phys = 64 * 1024 * 1024
    return int(min(phys * 3 // 4, 96 * 1024 * 1024))


def _input_proj_kernel(x_ref, w_ref, prm_ref, o_ref, *, eps: float):
    # x_ref   : (tm, K)  streaming dtype   (K = C * p * p patch vector)
    # w_ref   : (K, E)   streaming dtype, grid-invariant (resident in VMEM)
    # prm_ref : (3, E)   f32, rows = [conv bias, LN gamma, LN beta]
    # o_ref   : (tm, E)  output dtype
    h = jnp.dot(x_ref[...], w_ref[...], preferred_element_type=jnp.float32)
    prm = prm_ref[...]
    h = h + prm[0:1, :]                                    # conv bias

    # LayerNorm over the true embed_dim (last dim is unpadded).
    mean = jnp.mean(h, axis=-1, keepdims=True)
    centered = h - mean
    var = jnp.mean(centered * centered, axis=-1, keepdims=True)
    y = centered * jax.lax.rsqrt(var + eps) * prm[1:2, :] + prm[2:3, :]
    o_ref[...] = y.astype(o_ref.dtype)


def input_proj_pallas(x, conv_w, conv_b, ln_gamma, ln_beta, *,
                      patch_size=4, eps=1e-5, tm=2048, compute_dtype=None):
    """InputProj forward.

    x        : (B, C, H, W)
    conv_w   : (E, C, p, p)   PyTorch Conv2d weight layout
    conv_b   : (E,)
    ln_gamma : (E,)           LayerNorm weight
    ln_beta  : (E,)           LayerNorm bias
    returns  : (B, (H//p)*(W//p), E)
    """
    B, C, H, W = x.shape
    p = patch_size
    assert H % p == 0 and W % p == 0, "image size must be divisible by patch size"
    Hp, Wp = H // p, W // p
    E = conv_w.shape[0]
    K = C * p * p
    m = B * Hp * Wp

    out_dtype = x.dtype
    cdt = jnp.dtype(compute_dtype) if compute_dtype is not None else jnp.dtype(x.dtype)

    # --- patchify: rows ordered (b, hp, wp), matching conv(x).flatten(2)
    #     .transpose(1, 2) exactly.  This is ONE fused XLA transpose copy of x
    #     (the old separate jnp.pad pass is gone); the reshapes are free.
    # TODO(synk): move this gather into the kernel (index_map over NCHW patch
    # rows); blocked today by the (8,128) block constraint with p=4 sublanes.
    x2d = (x.reshape(B, C, Hp, p, Wp, p)
             .transpose(0, 2, 4, 1, 3, 5)
             .reshape(m, K)).astype(cdt)

    w2d = conv_w.reshape(E, K).T.astype(cdt)                           # (K, E)
    prm = jnp.stack([conv_b, ln_gamma, ln_beta]).astype(jnp.float32)   # (3, E)

    # --- row tiling: as large as the generation-aware VMEM budget allows, but
    #     with at least two grid steps (v7x megacore) when there is enough work.
    in_item = jnp.dtype(cdt).itemsize
    out_item = jnp.dtype(out_dtype).itemsize
    ceiling = _vmem_ceiling_bytes()
    resident = K * E * in_item + 8 * E * 4                  # weight + params tile
    per_row = 2 * K * in_item + 2 * E * out_item + 4 * E * 4  # 2x-buffered x/out + f32 temps
    tm_budget = max(16, ((ceiling // 2 - resident) // per_row) // 16 * 16)

    tm_eff = max(16, min(_round_up(tm, 16), tm_budget, _round_up(m, 16)))
    if pl.cdiv(m, tm_eff) < 2 and m > 16:
        # v7x has two TensorCores per chip: give the "parallel" axis >= 2 tiles.
        tm_eff = max(16, _round_up(pl.cdiv(m, 2), 16))
    grid = pl.cdiv(m, tm_eff)

    vmem_need = (resident
                 + 2 * tm_eff * K * in_item
                 + 2 * tm_eff * E * out_item
                 + 4 * tm_eff * E * 4)
    vmem_limit = int(min(ceiling, max(32 * 1024 * 1024, 2 * vmem_need)))

    cost = pl.CostEstimate(
        flops=2 * m * K * E + 10 * m * E,
        transcendentals=m,                             # one rsqrt per token row
        bytes_accessed=(m * K + K * E) * in_item + m * E * out_item + 3 * E * 4)

    invariant = dict(pipeline_mode=pl.Buffered(1))     # grid-invariant operands
    out2d = pl.pallas_call(
        functools.partial(_input_proj_kernel, eps=eps),
        out_shape=jax.ShapeDtypeStruct((m, E), out_dtype),
        grid=(grid,),
        in_specs=[
            pl.BlockSpec((tm_eff, K), lambda i: (i, 0)),            # x tile
            pl.BlockSpec((K, E), lambda i: (0, 0), **invariant),    # proj weight
            pl.BlockSpec((3, E), lambda i: (0, 0), **invariant),    # bias/gamma/beta
        ],
        out_specs=pl.BlockSpec((tm_eff, E), lambda i: (i, 0)),
        compiler_params=pltpu.CompilerParams(
            dimension_semantics=("parallel",),
            vmem_limit_bytes=vmem_limit),
        cost_estimate=cost,
    )(x2d, w2d, prm)

    # Free reshape (contiguous leading dims): no post-kernel slice copy.
    return out2d.reshape(B, Hp * Wp, E)


if __name__ == "__main__":
    # Small shapes consistent with the module: image input (B, C, H, W),
    # patch_size=4, in_channel=3, embed_dim=96 (module defaults), smaller image.
    B, C, H, W = 2, 3, 32, 32
    patch_size = 4
    embed_dim = 96

    key = jax.random.PRNGKey(0)
    kx, kw, kb, kg, kbt = jax.random.split(key, 5)

    x = jax.random.normal(kx, (B, C, H, W), jnp.float32)

    fan_in = C * patch_size * patch_size
    lim = 1.0 / math.sqrt(fan_in)
    conv_w = jax.random.uniform(kw, (embed_dim, C, patch_size, patch_size),
                                jnp.float32, -lim, lim)
    conv_b = jax.random.uniform(kb, (embed_dim,), jnp.float32, -lim, lim)
    # non-trivial LN affine so that code path is actually exercised
    ln_gamma = 1.0 + 0.05 * jax.random.normal(kg, (embed_dim,), jnp.float32)
    ln_beta = 0.05 * jax.random.normal(kbt, (embed_dim,), jnp.float32)

    y = input_proj_pallas(x, conv_w, conv_b, ln_gamma, ln_beta,
                          patch_size=patch_size)
    y = jax.block_until_ready(y)

    # ---- pure-JAX reference: real conv + flatten/transpose + LayerNorm ----
    conv = jax.lax.conv_general_dilated(
        x, conv_w, window_strides=(patch_size, patch_size), padding="VALID",
        dimension_numbers=("NCHW", "OIHW", "NCHW"),
        precision=jax.lax.Precision.HIGHEST)
    conv = conv + conv_b[None, :, None, None]                       # (B, E, Hp, Wp)
    ref = jnp.transpose(conv.reshape(B, embed_dim, -1), (0, 2, 1))  # (B, N, E)
    mu = ref.mean(-1, keepdims=True)
    var = jnp.mean((ref - mu) ** 2, axis=-1, keepdims=True)
    ref = (ref - mu) * jax.lax.rsqrt(var + 1e-5) * ln_gamma + ln_beta

    assert y.shape == ref.shape, (y.shape, ref.shape)
    err = float(jnp.max(jnp.abs(y - ref)))
    # tolerance accounts for MXU f32 pass decomposition inside the kernel matmul
    assert err < 2e-3, err

    print("KERNEL_OK")
</pallas_src>

<mosaic_0001>
module attributes {stable_mosaic.version = 11 : i64} {
  func.func @_input_proj_kernel(%arg0: i32, %arg1: memref<64x48xf32, #tpu.memory_space<vmem>>, %arg2: memref<48x96xf32, #tpu.memory_space<vmem>>, %arg3: memref<3x96xf32, #tpu.memory_space<vmem>>, %arg4: memref<64x96xf32, #tpu.memory_space<vmem>>) attributes {dimension_semantics = [#tpu.dimension_semantics<parallel>], iteration_bounds = array<i64: 2>, scalar_prefetch = 0 : i64, scratch_operands = 0 : i64, tpu.core_type = #tpu.core_type<tc>, window_params = [{transform_indices = @transform_0, window_bounds = array<i64: 64, 48>}, {pipeline_mode = #tpu.pipeline_mode<synchronous>, transform_indices = @transform_1, window_bounds = array<i64: 48, 96>}, {pipeline_mode = #tpu.pipeline_mode<synchronous>, transform_indices = @transform_2, window_bounds = array<i64: 3, 96>}, {transform_indices = @transform_3, window_bounds = array<i64: 64, 96>}]} {
    %c0 = arith.constant 0 : index
    %c0_0 = arith.constant 0 : index
    %0 = vector.load %arg1[%c0, %c0_0] : memref<64x48xf32, #tpu.memory_space<vmem>>, vector<64x48xf32>
    %c0_1 = arith.constant 0 : index
    %c0_2 = arith.constant 0 : index
    %1 = vector.load %arg2[%c0_1, %c0_2] : memref<48x96xf32, #tpu.memory_space<vmem>>, vector<48x96xf32>
    %cst = arith.constant dense<0.000000e+00> : vector<64x96xf32>
    %2 = tpu.matmul %0, %1, %cst {dimension_numbers = #tpu.dot_dimension_numbers<[1], [0], [0], [1], [0, 0, 1, 1], [], []>} : vector<64x48xf32>, vector<48x96xf32>, vector<64x96xf32> -> vector<64x96xf32>
    %c0_3 = arith.constant 0 : index
    %c0_4 = arith.constant 0 : index
    %3 = vector.load %arg3[%c0_3, %c0_4] : memref<3x96xf32, #tpu.memory_space<vmem>>, vector<3x96xf32>
    %4 = vector.extract_strided_slice %3 {offsets = [0, 0], sizes = [1, 96], strides = [1, 1]} : vector<3x96xf32> to vector<1x96xf32>
    %5 = vector.broadcast %4 : vector<1x96xf32> to vector<64x96xf32>
    %6 = arith.addf %2, %5 : vector<64x96xf32>
    %cst_5 = arith.constant dense<0.000000e+00> : vector<64xf32>
    %7 = vector.multi_reduction <add>, %6, %cst_5 [1] : vector<64x96xf32> to vector<64xf32>
    %8 = vector.shape_cast %7 : vector<64xf32> to vector<64x1xf32>
    %cst_6 = arith.constant 9.600000e+01 : f32
    %9 = vector.broadcast %cst_6 : f32 to vector<64x1xf32>
    %10 = arith.divf %8, %9 : vector<64x1xf32>
    %11 = vector.broadcast %10 : vector<64x1xf32> to vector<64x96xf32>
    %12 = arith.subf %6, %11 : vector<64x96xf32>
    %13 = arith.mulf %12, %12 : vector<64x96xf32>
    %cst_7 = arith.constant dense<0.000000e+00> : vector<64xf32>
    %14 = vector.multi_reduction <add>, %13, %cst_7 [1] : vector<64x96xf32> to vector<64xf32>
    %15 = vector.shape_cast %14 : vector<64xf32> to vector<64x1xf32>
    %cst_8 = arith.constant 9.600000e+01 : f32
    %16 = vector.broadcast %cst_8 : f32 to vector<64x1xf32>
    %17 = arith.divf %15, %16 : vector<64x1xf32>
    %cst_9 = arith.constant 9.99999974E-6 : f32
    %18 = vector.broadcast %cst_9 : f32 to vector<64x1xf32>
    %19 = arith.addf %17, %18 : vector<64x1xf32>
    %20 = math.rsqrt %19 : vector<64x1xf32>
    %21 = vector.broadcast %20 : vector<64x1xf32> to vector<64x96xf32>
    %22 = arith.mulf %12, %21 : vector<64x96xf32>
    %23 = vector.extract_strided_slice %3 {offsets = [1, 0], sizes = [1, 96], strides = [1, 1]} : vector<3x96xf32> to vector<1x96xf32>
    %24 = vector.broadcast %23 : vector<1x96xf32> to vector<64x96xf32>
    %25 = arith.mulf %22, %24 : vector<64x96xf32>
    %26 = vector.extract_strided_slice %3 {offsets = [2, 0], sizes = [1, 96], strides = [1, 1]} : vector<3x96xf32> to vector<1x96xf32>
    %27 = vector.broadcast %26 : vector<1x96xf32> to vector<64x96xf32>
    %28 = arith.addf %25, %27 : vector<64x96xf32>
    %c0_10 = arith.constant 0 : index
    %c0_11 = arith.constant 0 : index
    %29 = vector.load %arg4[%c0_10, %c0_11] : memref<64x96xf32, #tpu.memory_space<vmem>>, vector<64x96xf32>
    tpu.vector_store %arg4[%c0_10, %c0_11], %28 {strides = array<i32>} : memref<64x96xf32, #tpu.memory_space<vmem>>, vector<64x96xf32>,
    return
  }
  func.func @transform_0(%arg0: i32) -> (i32, i32) {
    %c0_i32 = arith.constant 0 : i32
    %c0_i32_0 = arith.constant 0 : i32
    return %arg0, %c0_i32 : i32, i32
  }
  func.func @transform_1(%arg0: i32) -> (i32, i32) {
    %c0_i32 = arith.constant 0 : i32
    %c0_i32_0 = arith.constant 0 : i32
    %c0_i32_1 = arith.constant 0 : i32
    return %c0_i32, %c0_i32_0 : i32, i32
  }
  func.func @transform_2(%arg0: i32) -> (i32, i32) {
    %c0_i32 = arith.constant 0 : i32
    %c0_i32_0 = arith.constant 0 : i32
    %c0_i32_1 = arith.constant 0 : i32
    return %c0_i32, %c0_i32_0 : i32, i32
  }
  func.func @transform_3(%arg0: i32) -> (i32, i32) {
    %c0_i32 = arith.constant 0 : i32
    %c0_i32_0 = arith.constant 0 : i32
    return %arg0, %c0_i32 : i32, i32
  }
}

</mosaic_0001>

<llo_original>
// kernel: tpu_custom_call.1
$region0: #{tpu_custom_call.1}
  #allocation0 [shape = 'u32[]', space=smem, size = 0x4, offset = 0x4, fixed_abs, tag = 'smem constant byte address 0x4 - core index']
  #allocation1 [shape = 'u32[144,128]{1,0:T(1,128)}', space=vmem, size = 0x12000, scoped, tag = 'internal scratch']
  %s0 = inlined_call_operand.vmem [shape: f32[128,48], index: 0, kind: input, shape index: {}]
  %s1 = inlined_call_operand.vmem [shape: f32[48,96], index: 1, kind: input, shape index: {}]
  %s2 = inlined_call_operand.vmem [shape: f32[3,96], index: 2, kind: input, shape index: {}]
  %s3 = inlined_call_operand.vmem [shape: f32[128,96], index: 3, kind: output, shape index: {}]
  %s4 = sld [smem:[#allocation0]]
  $region45: #{tpu_custom_call.1} parent=0
    _
  %s6 = ssub.s32 1, %s4
  %s7 = scalar_select 0, %s6, %s4
  loop: start=0, step=1, limit=4
  $region2: #{tpu_custom_call.1} parent=0 // loop_pre_header
    _
  $region3: #{tpu_custom_call.1} parent=0 // loop_header
    %s9 = sphi 0, %s13
    %p10 = scmp.ge.s32.totalorder %s9, 4
    %s19 = sphi 0, %s21
    %s22 = sphi 0, %s19
    %s23 = sphi 0, %s22
    %s39 = sphi 0, %s23
    %s43 = sphi 0, %s43
    %s45 = sphi 0, %s43
    %s46 = sphi 0, %s45
    %s60 = sphi 0, %s46
    %s64 = sphi 0, %s64
    %s66 = sphi 0, %s64
    %s67 = sphi 0, %s66
    %s81 = sphi 0, %s67
    %s87 = sphi 0, %s89
    %s90 = sphi 0, %s87
    %s91 = sphi 0, %s90
    %s107 = sphi 0, %s91
  $region4: #{tpu_custom_call.1} parent=0 // loop_header_branch
    %12 = sbr.rel (%p10) target = $region8
  $region5: #{tpu_custom_call.1} parent=0 // loop_body
    %s14 = ssub.s32 %s9, 1
    %s15 = ssub.s32 %s9, 2
    %s16 = sadd.s32 %s9, 1
    %s17 = ssub.s32 %s9, %s16
    %p18 = scmp.eq.s32.totalorder %s17, 0
    %s20 = sadd.s32 %s19, 1
    %s21 = scalar_select %p18, %s19, %s20
    %p24 = pneg %p18
    %p25 = scmp.eq.s32.totalorder %s9, 1
    %p26 = por %p24, %p25
    %p27 = scmp.ne.s32.totalorder %s19, %s22
    %p28 = scmp.eq.s32.totalorder %s9, 0
    %p29 = por %p27, %p28
    %p30 = scmp.ne.s32.totalorder %s19, %s22
    %p31 = scmp.eq.s32.totalorder %s14, 1
    %p32 = por %p30, %p31
    %p33 = scmp.ne.s32.totalorder %s22, %s23
    %p34 = scmp.eq.s32.totalorder %s14, 0
    %p35 = por %p33, %p34
    %p36 = scmp.ne.s32.totalorder %s22, %s23
    %p37 = scmp.eq.s32.totalorder %s15, 1
    %p38 = por %p36, %p37
    %p40 = scmp.ne.s32.totalorder %s23, %s39
    %p41 = scmp.eq.s32.totalorder %s15, 0
    %p42 = por %p40, %p41
    %s44 = sadd.s32 %s43, 1
    %p47 = scmp.eq.s32.totalorder %s9, 1
    %p48 = scmp.ne.s32.totalorder %s43, %s45
    %p49 = scmp.eq.s32.totalorder %s9, 0
    %p50 = por %p48, %p49
    %p51 = scmp.ne.s32.totalorder %s43, %s45
    %p52 = scmp.eq.s32.totalorder %s14, 1
    %p53 = por %p51, %p52
    %p54 = scmp.ne.s32.totalorder %s45, %s46
    %p55 = scmp.eq.s32.totalorder %s14, 0
    %p56 = por %p54, %p55
    %p57 = scmp.ne.s32.totalorder %s45, %s46
    %p58 = scmp.eq.s32.totalorder %s15, 1
    %p59 = por %p57, %p58
    %p61 = scmp.ne.s32.totalorder %s46, %s60
    %p62 = scmp.eq.s32.totalorder %s15, 0
    %p63 = por %p61, %p62
    %s65 = sadd.s32 %s64, 1
    %p68 = scmp.eq.s32.totalorder %s9, 1
    %p69 = scmp.ne.s32.totalorder %s64, %s66
    %p70 = scmp.eq.s32.totalorder %s9, 0
    %p71 = por %p69, %p70
    %p72 = scmp.ne.s32.totalorder %s64, %s66
    %p73 = scmp.eq.s32.totalorder %s14, 1
    %p74 = por %p72, %p73
    %p75 = scmp.ne.s32.totalorder %s66, %s67
    %p76 = scmp.eq.s32.totalorder %s14, 0
    %p77 = por %p75, %p76
    %p78 = scmp.ne.s32.totalorder %s66, %s67
    %p79 = scmp.eq.s32.totalorder %s15, 1
    %p80 = por %p78, %p79
    %p82 = scmp.ne.s32.totalorder %s67, %s81
    %p83 = scmp.eq.s32.totalorder %s15, 0
    %p84 = por %p82, %p83
    %s85 = ssub.s32 %s9, %s16
    %p86 = scmp.eq.s32.totalorder %s85, 0
    %s88 = sadd.s32 %s87, 1
    %s89 = scalar_select %p86, %s87, %s88
    %p92 = pneg %p86
    %p93 = scmp.eq.s32.totalorder %s9, 1
    %p94 = por %p92, %p93
    %p95 = scmp.ne.s32.totalorder %s87, %s90
    %p96 = scmp.eq.s32.totalorder %s9, 0
    %p97 = por %p95, %p96
    %p98 = scmp.ne.s32.totalorder %s87, %s90
    %p99 = scmp.eq.s32.totalorder %s14, 1
    %p100 = por %p98, %p99
    %p101 = scmp.ne.s32.totalorder %s90, %s91
    %p102 = scmp.eq.s32.totalorder %s14, 0
    %p103 = por %p101, %p102
    %p104 = scmp.ne.s32.totalorder %s90, %s91
    %p105 = scmp.eq.s32.totalorder %s15, 1
    %p106 = por %p104, %p105
    %p108 = scmp.ne.s32.totalorder %s91, %s107
    %p109 = scmp.eq.s32.totalorder %s15, 0
    %p110 = por %p108, %p109
    %p111 = scmp.le.s32.totalorder 1, %s9
    %p112 = scmp.lt.s32.totalorder %s9, 3
    %p113 = pnand %p111, %p112
    %p114 = pneg %p113
    // Predicated region
    $region9: #{tpu_custom_call.1} parent=5 // pred_check
      _
    $region10: #{tpu_custom_call.1} parent=5 // pred_check_branch
      %116 = sbr.rel (%p113) target = $region12
    $region11: #{tpu_custom_call.1} parent=5 // pred_region
      %s117 = ssub.s32 %s9, 1
      // Predicated region
      $region13: #{tpu_custom_call.1} parent=11 // pred_check
        %p118 = pneg %p56
      $region14: #{tpu_custom_call.1} parent=11 // pred_check_branch
        %120 = sbr.rel (%p118) target = $region16
      $region15: #{tpu_custom_call.1} parent=11 // pred_region
        _
      $region16: #{tpu_custom_call.1} parent=11 // pred_fallthru
        _
      // Predicated region
      $region17: #{tpu_custom_call.1} parent=11 // pred_check
        %p121 = pneg %p77
      $region18: #{tpu_custom_call.1} parent=11 // pred_check_branch
        %123 = sbr.rel (%p121) target = $region20
      $region19: #{tpu_custom_call.1} parent=11 // pred_region
        _
      $region20: #{tpu_custom_call.1} parent=11 // pred_fallthru
        _
    $region12: #{tpu_custom_call.1} parent=5 // pred_fallthru
      _
    %p124 = scmp.lt.s32.totalorder %s9, 2
    // Predicated region
    $region21: #{tpu_custom_call.1} parent=5 // pred_check
      %p125 = pneg %p124
    $region22: #{tpu_custom_call.1} parent=5 // pred_check_branch
      %127 = sbr.rel (%p125) target = $region24
    $region23: #{tpu_custom_call.1} parent=5 // pred_region
      // Predicated region
      $region25: #{tpu_custom_call.1} parent=23 // pred_check
        %p128 = pneg %p29
      $region26: #{tpu_custom_call.1} parent=23 // pred_check_branch
        %130 = sbr.rel (%p128) target = $region28
      $region27: #{tpu_custom_call.1} parent=23 // pred_region
        %s131 = smul.u32 8, %s9
        %p132 = scmp.lt.s32.totalorder %s131, 15
        %s133 = scalar_select %p132, %s131, 15
        %s134 = smul.addr %s133, 8
        %s135 = scalar_lea.vmem %s0, %s134
        %s136 = smul.u32 8, %s9
      $region28: #{tpu_custom_call.1} parent=23 // pred_fallthru
        _
    $region24: #{tpu_custom_call.1} parent=5 // pred_fallthru
      _
    %p137 = scmp.le.s32.totalorder 1, %s9
    %p138 = scmp.lt.s32.totalorder %s9, 3
    %p139 = pnand %p137, %p138
    %p140 = pneg %p139
    // Predicated region
    $region29: #{tpu_custom_call.1} parent=5 // pred_check
      _
    $region30: #{tpu_custom_call.1} parent=5 // pred_check_branch
      %142 = sbr.rel (%p139) target = $region32
    $region31: #{tpu_custom_call.1} parent=5 // pred_region
      %s143 = ssub.s32 %s9, 1
      %s144 = smul.u32 8, %s14
      %p145 = scmp.lt.s32.totalorder %s144, 15
      %s146 = scalar_select %p145, %s144, 15
      %s147 = smul.addr %s146, 8
      %s148 = scalar_lea.vmem %s0, %s147
      %p149 = pneg %p35
      %p150 = pneg %p32
      %p151 = pneg %p56
      %p152 = pneg %p53
      %p153 = pneg %p77
      %p154 = pneg %p74
      %p155 = pneg %p103
      %p156 = pneg %p100
      %s157 = smul.u32 8, %s14
      %p158 = scmp.lt.s32.totalorder %s157, 15
      %s159 = scalar_select %p158, %s157, 15
      %s160 = smul.addr %s159, 8
      %s161 = scalar_lea.vmem %s3, %s160
      %s162 = smul.u32 8, %s14
      %p163 = scmp.lt.s32.totalorder %s162, 15
      %s164 = scalar_select %p163, %s162, 15
      %s165 = smul.addr %s164, 8
      %s166 = scalar_lea.vmem %s0, %s165
      %s167 = smul.u32 8, %s14
      %s168 = smul.u32 8, %s14
      %p169 = scmp.lt.s32.totalorder %s168, 15
      %s170 = scalar_select %p169, %s168, 15
      %s171 = smul.addr %s170, 8
      %s172 = scalar_lea.vmem %s3, %s171
      %s173 = smul.u32 8, %s14
      %v174 = vld [vmem:[%s166] sm:$0xff]
      %v175 = vld [vmem:[%s166 + $0x8] sm:$0xff]
      %v176 = vld [vmem:[%s166 + $0x10] sm:$0xff]
      %v177 = vld [vmem:[%s166 + $0x18] sm:$0xff]
      %v178 = vld [vmem:[%s166 + $0x20] sm:$0xff]
      %v179 = vld [vmem:[%s166 + $0x28] sm:$0xff]
      %v180 = vld [vmem:[%s166 + $0x30] sm:$0xff]
      %v181 = vld [vmem:[%s166 + $0x38] sm:$0xff]
      %v182 = vld [vmem:[%s1] sm:$0xff]
      %v183 = vld [vmem:[%s1 + $0x8] sm:$0xff]
      %v184 = vld [vmem:[%s1 + $0x10] sm:$0xff]
      %v185 = vld [vmem:[%s1 + $0x18] sm:$0xff]
      %v186 = vld [vmem:[%s1 + $0x20] sm:$0xff]
      %v187 = vld [vmem:[%s1 + $0x28] sm:$0xff]
      %v188 = vld [vmem:[%s2] sm:$0x7]
      %v189 = vlaneseq
      %v190 = vshrl.u32 %v189, 7
      %v191 = vsub.s32 0, %v190
      %v192 = vrot.slane %v188, %v191
      %vm193 = vcmask 392192
      %v195 = vsel %vm193, %v174, 0
      %v198 = vsel %vm193, %v175, 0
      %v201 = vsel %vm193, %v176, 0
      %v204 = vsel %vm193, %v177, 0
      %v207 = vsel %vm193, %v178, 0
      %v210 = vsel %vm193, %v179, 0
      %v213 = vsel %vm193, %v180, 0
      %v216 = vsel %vm193, %v181, 0
      %218 = vmatprep.subr.mxu0 0.0
      %219 = vmatpush1.msra.mxu0 %v182
      %220 = vmatprep.subr.mxu0 0.0
      %221 = vmatpush1.msra.mxu0 %v183
      %222 = vmatprep.subr.mxu0 0.0
      %223 = vmatpush1.msra.mxu0 %v184
      %224 = vmatprep.subr.mxu0 0.0
      %225 = vmatpush1.msra.mxu0 %v185
      %226 = vmatprep.subr.mxu0 0.0
      %227 = vmatpush1.msra.mxu0 %v186
      %228 = vmatprep.subr.mxu0 0.0
      %229 = vmatpush1.msra.mxu0 %v187
      %230 = vmatprep.subr.mxu0 0.0
      %231 = vmatpush1.msra.mxu0 0.0
      %232 = vmatprep.subr.mxu0 0.0
      %233 = vmatpush1.msra.mxu0 0.0
      %234 = vmatprep.subr.mxu0 0.0
      %235 = vmatpush1.msra.mxu0 0.0
      %236 = vmatprep.subr.mxu0 0.0
      %237 = vmatpush1.msra.mxu0 0.0
      %238 = vmatprep.subr.mxu0 0.0
      %239 = vmatpush1.msra.mxu0 0.0
      %240 = vmatprep.subr.mxu0 0.0
      %241 = vmatpush1.msra.mxu0 0.0
      %242 = vmatprep.subr.mxu0 0.0
      %243 = vmatpush1.msra.mxu0 0.0
      %244 = vmatprep.subr.mxu0 0.0
      %245 = vmatpush1.msra.mxu0 0.0
      %246 = vmatprep.subr.mxu0 0.0
      %247 = vmatpush1.msra.mxu0 0.0
      %248 = vmatprep.subr.mxu0 0.0
      %249 = vmatpush1.msra.mxu0 0.0
      %250 = vmatprep.subr.mxu0 0.0
      %251 = vmatpush1.msra.mxu0 0.0
      %252 = vmatprep.subr.mxu0 0.0
      %253 = vmatpush1.msra.mxu0 0.0
      %254 = vmatprep.subr.mxu0 0.0
      %255 = vmatpush1.msra.mxu0 0.0
      %256 = vmatprep.subr.mxu0 0.0
      %257 = vmatpush1.msra.mxu0 0.0
      %258 = vmatprep.subr.mxu0 0.0
      %259 = vmatpush1.msra.mxu0 0.0
      %260 = vmatprep.subr.mxu0 0.0
      %261 = vmatpush1.msra.mxu0 0.0
      %262 = vmatprep.subr.mxu0 0.0
      %263 = vmatpush1.msra.mxu0 0.0
      %264 = vmatprep.subr.mxu0 0.0
      %265 = vmatpush1.msra.mxu0 0.0
      %266 = vmatprep.subr.mxu0 0.0
      %267 = vmatpush1.msra.mxu0 0.0
      %268 = vmatprep.subr.mxu0 0.0
      %269 = vmatpush1.msra.mxu0 0.0
      %270 = vmatprep.subr.mxu0 0.0
      %271 = vmatpush1.msra.mxu0 0.0
      %272 = vmatprep.subr.mxu0 0.0
      %273 = vmatpush1.msra.mxu0 0.0
      %274 = vmatprep.subr.mxu0 0.0
      %275 = vmatpush1.msra.mxu0 0.0
      %276 = vmatprep.subr.mxu0 0.0
      %277 = vmatpush1.msra.mxu0 0.0
      %278 = vmatprep.subr.mxu0 0.0
      %279 = vmatpush1.msra.mxu0 0.0
      %280 = vmatprep.subr.mxu0 0.0
      %281 = vmatpush1.msra.mxu0 0.0
      %282 = vmatprep.mubr.f32.mxu0 0.0
      %283 = vmatmul.mubr.f32.gmra.mrb[0].mxu0 %v195
      %v284 = vpop.f32.mrb[0].mxu0
      %v285 = vadd.f32 %v192, %v284
      %v286 = vpop.f32.mrb[0].mxu0
      %287 = vmatprep.mubr.f32.mxu0 0.0
      %288 = vmatmul.mubr.f32.gmra.mrb[0].mxu0 %v198
      %v289 = vpop.f32.mrb[0].mxu0
      %v290 = vadd.f32 %v192, %v289
      %v291 = vpop.f32.mrb[0].mxu0
      %292 = vmatprep.mubr.f32.mxu0 0.0
      %293 = vmatmul.mubr.f32.gmra.mrb[0].mxu0 %v201
      %v294 = vpop.f32.mrb[0].mxu0
      %v295 = vadd.f32 %v192, %v294
      %v296 = vpop.f32.mrb[0].mxu0
      %297 = vmatprep.mubr.f32.mxu0 0.0
      %298 = vmatmul.mubr.f32.gmra.mrb[0].mxu0 %v204
      %v299 = vpop.f32.mrb[0].mxu0
      %v300 = vadd.f32 %v192, %v299
      %v301 = vpop.f32.mrb[0].mxu0
      %302 = vmatprep.mubr.f32.mxu0 0.0
      %303 = vmatmul.mubr.f32.gmra.mrb[0].mxu0 %v207
      %v304 = vpop.f32.mrb[0].mxu0
      %v305 = vadd.f32 %v192, %v304
      %v306 = vpop.f32.mrb[0].mxu0
      %307 = vmatprep.mubr.f32.mxu0 0.0
      %308 = vmatmul.mubr.f32.gmra.mrb[0].mxu0 %v210
      %v309 = vpop.f32.mrb[0].mxu0
      %v310 = vadd.f32 %v192, %v309
      %v311 = vpop.f32.mrb[0].mxu0
      %312 = vmatprep.mubr.f32.mxu0 0.0
      %313 = vmatmul.mubr.f32.gmra.mrb[0].mxu0 %v213
      %v314 = vpop.f32.mrb[0].mxu0
      %v315 = vadd.f32 %v192, %v314
      %v316 = vpop.f32.mrb[0].mxu0
      %317 = vmatprep.mubr.f32.mxu0 0.0
      %318 = vmatmul.mubr.f32.gmra.mrb[0].mxu0 %v216
      %v319 = vpop.f32.mrb[0].mxu0
      %v320 = vadd.f32 %v192, %v319
      %v321 = vpop.f32.mrb[0].mxu0
      %322 = vdwg.mxu0
      %vm323 = vcmask 785408
      %v324 = vsel %vm323, %v285, 0.0
      %325 = vadd.xlane.f32.xlu0 %v324
      %v326 = vpop.xlane.xlu0 %325
      %v327 = vsel %vm323, %v290, 0.0
      %328 = vadd.xlane.f32.xlu0 %v327
      %v329 = vpop.xlane.xlu0 %328
      %v330 = vsel %vm323, %v295, 0.0
      %331 = vadd.xlane.f32.xlu0 %v330
      %v332 = vpop.xlane.xlu0 %331
      %v333 = vsel %vm323, %v300, 0.0
      %334 = vadd.xlane.f32.xlu0 %v333
      %v335 = vpop.xlane.xlu0 %334
      %v336 = vsel %vm323, %v305, 0.0
      %337 = vadd.xlane.f32.xlu0 %v336
      %v338 = vpop.xlane.xlu0 %337
      %v339 = vsel %vm323, %v310, 0.0
      %340 = vadd.xlane.f32.xlu0 %v339
      %v341 = vpop.xlane.xlu0 %340
      %v342 = vsel %vm323, %v315, 0.0
      %343 = vadd.xlane.f32.xlu0 %v342
      %v344 = vpop.xlane.xlu0 %343
      %v345 = vsel %vm323, %v320, 0.0
      %346 = vadd.xlane.f32.xlu0 %v345
      %v347 = vpop.xlane.xlu0 %346
      %v348 = vrcp.pop 96.0
      %v349 = vmul.f32 %v326, %v348
      %v350 = vmul.f32 %v329, %v348
      %v351 = vmul.f32 %v332, %v348
      %v352 = vmul.f32 %v335, %v348
      %v353 = vmul.f32 %v338, %v348
      %v354 = vmul.f32 %v341, %v348
      %v355 = vmul.f32 %v344, %v348
      %v356 = vmul.f32 %v347, %v348
      %v357 = vsub.f32 %v285, %v349
      %v358 = vsub.f32 %v290, %v350
      %v359 = vsub.f32 %v295, %v351
      %v360 = vsub.f32 %v300, %v352
      %v361 = vsub.f32 %v305, %v353
      %v362 = vsub.f32 %v310, %v354
      %v363 = vsub.f32 %v315, %v355
      %v364 = vsub.f32 %v320, %v356
      %v365 = vmul.f32 %v357, %v357
      %v366 = vmul.f32 %v358, %v358
      %v367 = vmul.f32 %v359, %v359
      %v368 = vmul.f32 %v360, %v360
      %v369 = vmul.f32 %v361, %v361
      %v370 = vmul.f32 %v362, %v362
      %v371 = vmul.f32 %v363, %v363
      %v372 = vmul.f32 %v364, %v364
      %v373 = vsel %vm323, %v365, 0.0
      %374 = vadd.xlane.f32.xlu0 %v373
      %v375 = vpop.xlane.xlu0 %374
      %v376 = vsel %vm323, %v366, 0.0
      %377 = vadd.xlane.f32.xlu0 %v376
      %v378 = vpop.xlane.xlu0 %377
      %v379 = vsel %vm323, %v367, 0.0
      %380 = vadd.xlane.f32.xlu0 %v379
      %v381 = vpop.xlane.xlu0 %380
      %v382 = vsel %vm323, %v368, 0.0
      %383 = vadd.xlane.f32.xlu0 %v382
      %v384 = vpop.xlane.xlu0 %383
      %v385 = vsel %vm323, %v369, 0.0
      %386 = vadd.xlane.f32.xlu0 %v385
      %v387 = vpop.xlane.xlu0 %386
      %v388 = vsel %vm323, %v370, 0.0
      %389 = vadd.xlane.f32.xlu0 %v388
      %v390 = vpop.xlane.xlu0 %389
      %v391 = vsel %vm323, %v371, 0.0
      %392 = vadd.xlane.f32.xlu0 %v391
      %v393 = vpop.xlane.xlu0 %392
      %v394 = vsel %vm323, %v372, 0.0
      %395 = vadd.xlane.f32.xlu0 %v394
      %v396 = vpop.xlane.xlu0 %395
      %v397 = vmul.f32 %v375, %v348
      %v398 = vmul.f32 %v378, %v348
      %v399 = vmul.f32 %v381, %v348
      %v400 = vmul.f32 %v384, %v348
      %v401 = vmul.f32 %v387, %v348
      %v402 = vmul.f32 %v390, %v348
      %v403 = vmul.f32 %v393, %v348
      %v404 = vmul.f32 %v396, %v348
      %v405 = vadd.f32 %v397, 1e-05
      %v406 = vadd.f32 %v398, 1e-05
      %v407 = vadd.f32 %v399, 1e-05
      %v408 = vadd.f32 %v400, 1e-05
      %v409 = vadd.f32 %v401, 1e-05
      %v410 = vadd.f32 %v402, 1e-05
      %v411 = vadd.f32 %v403, 1e-05
      %v412 = vadd.f32 %v404, 1e-05
      %v413 = vrsqrt.pop %v405
      %v414 = vrsqrt.pop %v406
      %v415 = vrsqrt.pop %v407
      %v416 = vrsqrt.pop %v408
      %v417 = vrsqrt.pop %v409
      %v418 = vrsqrt.pop %v410
      %v419 = vrsqrt.pop %v411
      %v420 = vrsqrt.pop %v412
      %v421 = vmul.f32 %v357, %v413
      %v422 = vmul.f32 %v358, %v414
      %v423 = vmul.f32 %v359, %v415
      %v424 = vmul.f32 %v360, %v416
      %v425 = vmul.f32 %v361, %v417
      %v426 = vmul.f32 %v362, %v418
      %v427 = vmul.f32 %v363, %v419
      %v428 = vmul.f32 %v364, %v420
      %v429 = vlaneseq
      %v430 = vshrl.u32 %v429, 7
      %v431 = vsub.s32 1, %v430
      %v432 = vrot.slane %v188, %v431
      %v433 = vmul.f32 %v421, %v432
      %v434 = vmul.f32 %v422, %v432
      %v435 = vmul.f32 %v423, %v432
      %v436 = vmul.f32 %v424, %v432
      %v437 = vmul.f32 %v425, %v432
      %v438 = vmul.f32 %v426, %v432
      %v439 = vmul.f32 %v427, %v432
      %v440 = vmul.f32 %v428, %v432
      %v441 = vlaneseq
      %v442 = vshrl.u32 %v441, 7
      %v443 = vsub.s32 2, %v442
      %v444 = vrot.slane %v188, %v443
      %v445 = vadd.f32 %v433, %v444
      %v446 = vadd.f32 %v434, %v444
      %v447 = vadd.f32 %v435, %v444
      %v448 = vadd.f32 %v436, %v444
      %v449 = vadd.f32 %v437, %v444
      %v450 = vadd.f32 %v438, %v444
      %v451 = vadd.f32 %v439, %v444
      %v452 = vadd.f32 %v440, %v444
      %453 = vst.msk [vmem:[%s172] sm:$0xff] %vm323, %v445
      %454 = vst.msk [vmem:[%s172 + $0x8] sm:$0xff] %vm323, %v446
      %455 = vst.msk [vmem:[%s172 + $0x10] sm:$0xff] %vm323, %v447
      %456 = vst.msk [vmem:[%s172 + $0x18] sm:$0xff] %vm323, %v448
      %457 = vst.msk [vmem:[%s172 + $0x20] sm:$0xff] %vm323, %v449
      %458 = vst.msk [vmem:[%s172 + $0x28] sm:$0xff] %vm323, %v450
      %459 = vst.msk [vmem:[%s172 + $0x30] sm:$0xff] %vm323, %v451
      %460 = vst.msk [vmem:[%s172 + $0x38] sm:$0xff] %vm323, %v452
      %s461 = smul.u32 8, %s14
      %p462 = scmp.lt.s32.totalorder %s461, 15
      %s463 = scalar_select %p462, %s461, 15
      %s464 = smul.addr %s463, 8
      %s465 = scalar_lea.vmem %s3, %s464
      // Predicated region
      $region33: #{tpu_custom_call.1} parent=31 // pred_check
        %p466 = pneg %p100
      $region34: #{tpu_custom_call.1} parent=31 // pred_check_branch
        %468 = sbr.rel (%p466) target = $region36
      $region35: #{tpu_custom_call.1} parent=31 // pred_region
        %s469 = smul.u32 8, %s14
      $region36: #{tpu_custom_call.1} parent=31 // pred_fallthru
        _
    $region32: #{tpu_custom_call.1} parent=5 // pred_fallthru
      _
    %p470 = scmp.le.s32.totalorder 2, %s9
    // Predicated region
    $region37: #{tpu_custom_call.1} parent=5 // pred_check
      %p471 = pneg %p470
    $region38: #{tpu_custom_call.1} parent=5 // pred_check_branch
      %473 = sbr.rel (%p471) target = $region40
    $region39: #{tpu_custom_call.1} parent=5 // pred_region
      %s474 = ssub.s32 %s9, 2
      // Predicated region
      $region41: #{tpu_custom_call.1} parent=39 // pred_check
        %p475 = pneg %p106
      $region42: #{tpu_custom_call.1} parent=39 // pred_check_branch
        %477 = sbr.rel (%p475) target = $region44
      $region43: #{tpu_custom_call.1} parent=39 // pred_region
        %s478 = smul.u32 8, %s15
        %p479 = scmp.lt.s32.totalorder %s478, 15
        %s480 = scalar_select %p479, %s478, 15
        %s481 = smul.addr %s480, 8
        %s482 = scalar_lea.vmem %s3, %s481
      $region44: #{tpu_custom_call.1} parent=39 // pred_fallthru
        _
    $region40: #{tpu_custom_call.1} parent=5 // pred_fallthru
      _
  $region6: #{tpu_custom_call.1} parent=0 // loop_footer
    %s13 = sadd.s32 1, %s9
  $region7: #{tpu_custom_call.1} parent=0 // loop_footer_branch
    %8 = sbr.rel target = $region3
  $region8: #{tpu_custom_call.1} parent=0 // loop_exit
    _

</llo_original>
